<compile_context>
chip_gen: v5e
topology: v5e:2x2
jax: 0.10.0
libtpu: 0.0.40
codegen_flags: <defaults>
</compile_context>

<pallas_src>
from functools import partial

import jax
import jax.numpy as jnp
from jax.experimental import pallas as pl
from jax.experimental.pallas import tpu as pltpu

EPS = 1e-5  # nn.BatchNorm2d default eps


def fused_conv_bn_kernel(x_ref, w_ref, group_ref, gamma_ref, beta_ref, o_ref, *, inv_m):
    """Fused Conv2d (stride 1) + training-mode BatchNorm2d for the whole batch.

    x_ref:     (M, K)       height-stacked im2col input, M = N*OH, K = KH*IWp*CIN
    w_ref:     (K, OWC)     width-Toeplitz conv weights, OWC = OW*COUT (lane-dense)
    group_ref: (OWC, OWC)   channel-grouping matrix: G[i,j] = 1 iff i%COUT == j%COUT
    gamma_ref: (1, OWC)     BN weight, tiled over ow positions
    beta_ref:  (1, OWC)     BN bias, tiled over ow positions
    o_ref:     (M, OWC)     normalized output (lane-dense)
    """
    # Single MXU contraction (K = 216 here, one push/pop sequence).
    acc = jnp.dot(x_ref[...], w_ref[...], preferred_element_type=jnp.float32)

    # Per-column partial BN statistics (sublane reduction, cheap) ...
    col_sum = jnp.sum(acc, axis=0, keepdims=True)           # (1, OWC)
    col_sq = jnp.sum(acc * acc, axis=0, keepdims=True)      # (1, OWC)
    # ... then one small matmul against the grouping matrix simultaneously reduces
    # across ow positions AND broadcasts the per-channel result back to all lanes.
    stats = jnp.concatenate([col_sum, col_sq], axis=0)      # (2, OWC)
    ch = jnp.dot(stats, group_ref[...], preferred_element_type=jnp.float32)

    mean = ch[0:1, :] * inv_m                                # per-channel mean
    var = ch[1:2, :] * inv_m - mean * mean                   # biased batch variance
    inv_std = jax.lax.rsqrt(var + EPS)                       # EUP slot

    scale = gamma_ref[...] * inv_std
    # The conv bias is cancelled exactly by the training-mode BN mean subtraction,
    # so it never enters the result.
    shift = beta_ref[...] - mean * scale

    # Fused FMA epilogue on the resident accumulator; lane-dense unmasked store.
    o_ref[...] = (acc * scale + shift).astype(o_ref.dtype)


def conv_bn_2d(x_nchw, weight, bias, gamma, beta, padding):
    """x_nchw: (N, CIN, H, W); weight: (COUT, CIN, KH, KW) — PyTorch conventions."""
    N, CIN, IH, IW = x_nchw.shape
    COUT, _, KH, KW = weight.shape
    OH = IH + 2 * padding - KH + 1
    OW = IW + 2 * padding - KW + 1
    IHp, IWp = IH + 2 * padding, IW + 2 * padding
    IWC = IWp * CIN
    OWC = OW * COUT
    Kdim = KH * IWC
    Mrows = N * OH
    Mtot = N * OH * OW

    # ---- layout glue (plain JAX, one-time) ---------------------------------
    x_nhwc = jnp.transpose(x_nchw, (0, 2, 3, 1))
    x_pad = jnp.pad(x_nhwc, ((0, 0), (padding, padding), (padding, padding), (0, 0)))
    x_flat = x_pad.reshape(N, IHp, IWC).astype(jnp.float32)  # lane idx = iw*CIN + cin
    # Height-stacked im2col: row index (n, oh), K index = kh*IWC + iw*CIN + cin.
    x_im2col = jnp.concatenate(
        [x_flat[:, kh:kh + OH, :] for kh in range(KH)], axis=-1
    ).reshape(Mrows, Kdim)

    # Width-Toeplitz weight: Wbig[kh, iw*CIN+cin, ow*COUT+c] = w[c,cin,kh,iw-ow]
    # for 0 <= iw-ow < KW, else 0; flattened over kh to match the im2col K index.
    w_t = jnp.transpose(weight, (2, 3, 1, 0)).astype(jnp.float32)  # (KH,KW,CIN,COUT)
    w_big = jnp.zeros((KH, IWp, CIN, OW, COUT), jnp.float32)
    for ow in range(OW):
        w_big = w_big.at[:, ow:ow + KW, :, ow, :].set(w_t)
    w_flat = w_big.reshape(Kdim, OWC)

    # Channel-grouping matrix for the in-kernel per-channel reduce-and-broadcast.
    lane = jnp.arange(OWC)
    group = (lane[:, None] % COUT == lane[None, :] % COUT).astype(jnp.float32)

    gamma_row = jnp.tile(gamma.astype(jnp.float32), OW).reshape(1, OWC)
    beta_row = jnp.tile(beta.astype(jnp.float32), OW).reshape(1, OWC)
    del bias  # cancels exactly with training-mode BN mean subtraction

    # ---- single fused pallas_call ------------------------------------------
    kern = partial(fused_conv_bn_kernel, inv_m=1.0 / Mtot)
    out_rows = pl.pallas_call(
        kern,
        out_shape=jax.ShapeDtypeStruct((Mrows, OWC), x_nchw.dtype),
        grid=(1,),
        in_specs=[pl.BlockSpec((Mrows, Kdim), lambda i: (0, 0)),
                  pl.BlockSpec((Kdim, OWC), lambda i: (0, 0)),
                  pl.BlockSpec((OWC, OWC), lambda i: (0, 0)),
                  pl.BlockSpec((1, OWC), lambda i: (0, 0)),
                  pl.BlockSpec((1, OWC), lambda i: (0, 0))],
        out_specs=pl.BlockSpec((Mrows, OWC), lambda i: (0, 0)),
        compiler_params=pltpu.CompilerParams(
            dimension_semantics=("arbitrary",),
            vmem_limit_bytes=32 * 1024 * 1024),       # safe on v5e/v6e/v7x
        cost_estimate=pl.CostEstimate(
            flops=2 * Mrows * Kdim * OWC + 2 * 2 * OWC * OWC,
            transcendentals=OWC,
            bytes_accessed=4 * (Mrows * Kdim + Kdim * OWC + OWC * OWC
                                + 2 * OWC + Mrows * OWC)),
    )(x_im2col, w_flat, group, gamma_row, beta_row)

    out_nhwc = out_rows.reshape(N, OH, OW, COUT)
    return jnp.transpose(out_nhwc, (0, 3, 1, 2))      # back to NCHW


def reference(x, weight, bias, gamma, beta, padding):
    y = jax.lax.conv_general_dilated(
        x, weight, window_strides=(1, 1),
        padding=[(padding, padding), (padding, padding)],
        dimension_numbers=("NCHW", "OIHW", "NCHW"))
    y = y + bias.reshape(1, -1, 1, 1)
    mean = jnp.mean(y, axis=(0, 2, 3), keepdims=True)
    var = jnp.mean((y - mean) ** 2, axis=(0, 2, 3), keepdims=True)
    return (gamma.reshape(1, -1, 1, 1) * (y - mean) / jnp.sqrt(var + EPS)
            + beta.reshape(1, -1, 1, 1))


if __name__ == "__main__":
    # ConvBn2d(in_channels=4, out_channels=8, kernel_size=3, padding=1)
    # applied to x of shape (2, 4, 16, 16).
    N, CIN, H, W = 2, 4, 16, 16
    COUT, K, PAD = 8, 3, 1

    key = jax.random.PRNGKey(0)
    kx, kw, kb, kg, kbe = jax.random.split(key, 5)
    x = jax.random.normal(kx, (N, CIN, H, W), jnp.float32)
    weight = jax.random.normal(kw, (COUT, CIN, K, K), jnp.float32) * 0.1
    bias = jax.random.normal(kb, (COUT,), jnp.float32) * 0.1
    gamma = 1.0 + 0.1 * jax.random.normal(kg, (COUT,), jnp.float32)   # BN weight
    beta = 0.1 * jax.random.normal(kbe, (COUT,), jnp.float32)         # BN bias

    out = conv_bn_2d(x, weight, bias, gamma, beta, PAD)
    out = jax.block_until_ready(out)

    ref = reference(x, weight, bias, gamma, beta, PAD)
    assert out.shape == (N, COUT, H, W), out.shape
    err = float(jnp.max(jnp.abs(out - ref)))
    assert jnp.allclose(out, ref, atol=1e-4, rtol=1e-4), err

    print("KERNEL_OK")
</pallas_src>

<mosaic_0001>
module attributes {stable_mosaic.version = 11 : i64} {
  func.func @fused_conv_bn_kernel(%arg0: i32, %arg1: memref<32x216xf32, #tpu.memory_space<vmem>>, %arg2: memref<216x128xf32, #tpu.memory_space<vmem>>, %arg3: memref<128x128xf32, #tpu.memory_space<vmem>>, %arg4: memref<1x128xf32, #tpu.memory_space<vmem>>, %arg5: memref<1x128xf32, #tpu.memory_space<vmem>>, %arg6: memref<32x128xf32, #tpu.memory_space<vmem>>) attributes {dimension_semantics = [#tpu.dimension_semantics<arbitrary>], iteration_bounds = array<i64: 1>, scalar_prefetch = 0 : i64, scratch_operands = 0 : i64, tpu.core_type = #tpu.core_type<tc>, window_params = [{pipeline_mode = #tpu.pipeline_mode<synchronous>, transform_indices = @transform_0, window_bounds = array<i64: 32, 216>}, {pipeline_mode = #tpu.pipeline_mode<synchronous>, transform_indices = @transform_1, window_bounds = array<i64: 216, 128>}, {pipeline_mode = #tpu.pipeline_mode<synchronous>, transform_indices = @transform_2, window_bounds = array<i64: 128, 128>}, {pipeline_mode = #tpu.pipeline_mode<synchronous>, transform_indices = @transform_3, window_bounds = array<i64: 1, 128>}, {pipeline_mode = #tpu.pipeline_mode<synchronous>, transform_indices = @transform_4, window_bounds = array<i64: 1, 128>}, {pipeline_mode = #tpu.pipeline_mode<synchronous>, transform_indices = @transform_5, window_bounds = array<i64: 32, 128>}]} {
    %c0 = arith.constant 0 : index
    %c0_0 = arith.constant 0 : index
    %0 = vector.load %arg1[%c0, %c0_0] : memref<32x216xf32, #tpu.memory_space<vmem>>, vector<32x216xf32>
    %c0_1 = arith.constant 0 : index
    %c0_2 = arith.constant 0 : index
    %1 = vector.load %arg2[%c0_1, %c0_2] : memref<216x128xf32, #tpu.memory_space<vmem>>, vector<216x128xf32>
    %cst = arith.constant dense<0.000000e+00> : vector<32x128xf32>
    %2 = tpu.matmul %0, %1, %cst {dimension_numbers = #tpu.dot_dimension_numbers<[1], [0], [0], [1], [0, 0, 1, 1], [], []>} : vector<32x216xf32>, vector<216x128xf32>, vector<32x128xf32> -> vector<32x128xf32>
    %cst_3 = arith.constant dense<0.000000e+00> : vector<128xf32>
    %3 = vector.multi_reduction <add>, %2, %cst_3 [0] : vector<32x128xf32> to vector<128xf32>
    %4 = vector.shape_cast %3 : vector<128xf32> to vector<1x128xf32>
    %5 = arith.mulf %2, %2 : vector<32x128xf32>
    %cst_4 = arith.constant dense<0.000000e+00> : vector<128xf32>
    %6 = vector.multi_reduction <add>, %5, %cst_4 [0] : vector<32x128xf32> to vector<128xf32>
    %7 = vector.shape_cast %6 : vector<128xf32> to vector<1x128xf32>
    %8 = tpu.concatenate %4, %7 in 0 : vector<1x128xf32>, vector<1x128xf32> -> vector<2x128xf32>
    %c0_5 = arith.constant 0 : index
    %c0_6 = arith.constant 0 : index
    %9 = vector.load %arg3[%c0_5, %c0_6] : memref<128x128xf32, #tpu.memory_space<vmem>>, vector<128x128xf32>
    %cst_7 = arith.constant dense<0.000000e+00> : vector<2x128xf32>
    %10 = tpu.matmul %8, %9, %cst_7 {dimension_numbers = #tpu.dot_dimension_numbers<[1], [0], [0], [1], [0, 0, 1, 1], [], []>} : vector<2x128xf32>, vector<128x128xf32>, vector<2x128xf32> -> vector<2x128xf32>
    %11 = vector.extract_strided_slice %10 {offsets = [0, 0], sizes = [1, 128], strides = [1, 1]} : vector<2x128xf32> to vector<1x128xf32>
    %cst_8 = arith.constant 0.001953125 : f32
    %12 = vector.broadcast %cst_8 : f32 to vector<1x128xf32>
    %13 = arith.mulf %11, %12 : vector<1x128xf32>
    %14 = vector.extract_strided_slice %10 {offsets = [1, 0], sizes = [1, 128], strides = [1, 1]} : vector<2x128xf32> to vector<1x128xf32>
    %cst_9 = arith.constant 0.001953125 : f32
    %15 = vector.broadcast %cst_9 : f32 to vector<1x128xf32>
    %16 = arith.mulf %14, %15 : vector<1x128xf32>
    %17 = arith.mulf %13, %13 : vector<1x128xf32>
    %18 = arith.subf %16, %17 : vector<1x128xf32>
    %cst_10 = arith.constant 9.99999974E-6 : f32
    %19 = vector.broadcast %cst_10 : f32 to vector<1x128xf32>
    %20 = arith.addf %18, %19 : vector<1x128xf32>
    %21 = math.rsqrt %20 : vector<1x128xf32>
    %c0_11 = arith.constant 0 : index
    %c0_12 = arith.constant 0 : index
    %22 = vector.load %arg4[%c0_11, %c0_12] : memref<1x128xf32, #tpu.memory_space<vmem>>, vector<1x128xf32>
    %23 = arith.mulf %22, %21 : vector<1x128xf32>
    %c0_13 = arith.constant 0 : index
    %c0_14 = arith.constant 0 : index
    %24 = vector.load %arg5[%c0_13, %c0_14] : memref<1x128xf32, #tpu.memory_space<vmem>>, vector<1x128xf32>
    %25 = arith.mulf %13, %23 : vector<1x128xf32>
    %26 = arith.subf %24, %25 : vector<1x128xf32>
    %27 = vector.broadcast %23 : vector<1x128xf32> to vector<32x128xf32>
    %28 = arith.mulf %2, %27 : vector<32x128xf32>
    %29 = vector.broadcast %26 : vector<1x128xf32> to vector<32x128xf32>
    %30 = arith.addf %28, %29 : vector<32x128xf32>
    %c0_15 = arith.constant 0 : index
    %c0_16 = arith.constant 0 : index
    %31 = vector.load %arg6[%c0_15, %c0_16] : memref<32x128xf32, #tpu.memory_space<vmem>>, vector<32x128xf32>
    tpu.vector_store %arg6[%c0_15, %c0_16], %30 {strides = array<i32>} : memref<32x128xf32, #tpu.memory_space<vmem>>, vector<32x128xf32>,
    return
  }
  func.func @transform_0(%arg0: i32) -> (i32, i32) {
    %c0_i32 = arith.constant 0 : i32
    %c0_i32_0 = arith.constant 0 : i32
    %c0_i32_1 = arith.constant 0 : i32
    return %c0_i32, %c0_i32_0 : i32, i32
  }
  func.func @transform_1(%arg0: i32) -> (i32, i32) {
    %c0_i32 = arith.constant 0 : i32
    %c0_i32_0 = arith.constant 0 : i32
    %c0_i32_1 = arith.constant 0 : i32
    return %c0_i32, %c0_i32_0 : i32, i32
  }
  func.func @transform_2(%arg0: i32) -> (i32, i32) {
    %c0_i32 = arith.constant 0 : i32
    %c0_i32_0 = arith.constant 0 : i32
    %c0_i32_1 = arith.constant 0 : i32
    return %c0_i32, %c0_i32_0 : i32, i32
  }
  func.func @transform_3(%arg0: i32) -> (i32, i32) {
    %c0_i32 = arith.constant 0 : i32
    %c0_i32_0 = arith.constant 0 : i32
    %c0_i32_1 = arith.constant 0 : i32
    return %c0_i32, %c0_i32_0 : i32, i32
  }
  func.func @transform_4(%arg0: i32) -> (i32, i32) {
    %c0_i32 = arith.constant 0 : i32
    %c0_i32_0 = arith.constant 0 : i32
    %c0_i32_1 = arith.constant 0 : i32
    return %c0_i32, %c0_i32_0 : i32, i32
  }
  func.func @transform_5(%arg0: i32) -> (i32, i32) {
    %c0_i32 = arith.constant 0 : i32
    %c0_i32_0 = arith.constant 0 : i32
    %c0_i32_1 = arith.constant 0 : i32
    return %c0_i32, %c0_i32_0 : i32, i32
  }
}

</mosaic_0001>

<llo_original>
// kernel: tpu_custom_call.1
$region0: #{tpu_custom_call.1}
  #allocation0 [shape = 'u32[]', space=smem, size = 0x4, offset = 0x4, fixed_abs, tag = 'smem constant byte address 0x4 - core index']
  #allocation1 [shape = 'u32[72,128]{1,0:T(1,128)}', space=vmem, size = 0x9000, scoped, tag = 'internal scratch']
  %s0 = inlined_call_operand.hbm [shape: f32[32,216], index: 0, kind: input, shape index: {}]
  %s1 = inlined_call_operand.hbm [shape: f32[216,128], index: 1, kind: input, shape index: {}]
  %s2 = inlined_call_operand.hbm [shape: f32[128,128], index: 2, kind: input, shape index: {}]
  %s3 = inlined_call_operand.vmem [shape: f32[1,128], index: 3, kind: input, shape index: {}]
  %s4 = inlined_call_operand.vmem [shape: f32[1,128], index: 4, kind: input, shape index: {}]
  %s5 = inlined_call_operand.hbm [shape: f32[32,128], index: 5, kind: output, shape index: {}]
  %s6 = sld [smem:[#allocation0]]
  $region42: #{tpu_custom_call.1} parent=0
    _
  %s8 = ssub.s32 1, %s6
  %s9 = scalar_select 0, %s8, %s6
  $region1: #{tpu_custom_call.1} parent=0
    #allocation2 [shape = 'u8[32768]{0}', space=vmem, size = 0x8000, scoped, tag = 'input window, operand 0, single buffered']
    #allocation3 [shape = 's32[1]{0}', space=sflag, size = 0x4, scoped, tag = 'scoped memory for tpu_custom_call.1']
    #allocation4 [shape = 's32[1]{0}', space=sflag, size = 0x4, scoped, tag = 'scoped memory for tpu_custom_call.1']
    #allocation5 [shape = 'u8[110592]{0}', space=vmem, size = 0x1b000, scoped, tag = 'input window, operand 1, single buffered']
    #allocation6 [shape = 's32[1]{0}', space=sflag, size = 0x4, scoped, tag = 'scoped memory for tpu_custom_call.1']
    #allocation7 [shape = 'u8[65536]{0}', space=vmem, size = 0x10000, scoped, tag = 'input window, operand 2, single buffered']
    #allocation8 [shape = 'u8[16384]{0}', space=vmem, size = 0x4000, scoped, tag = 'output window, operand 0, single buffered']
    %10 = vsyncpa [#allocation3], 0
    %11 = vsyncpa [#allocation6], 0
    %12 = vsyncpa [#allocation4], 0
    // Predicated region
    $region2: #{tpu_custom_call.1} parent=1 // pred_check
      _
    $region3: #{tpu_custom_call.1} parent=1 // pred_check_branch
      %14 = sbr.rel (0) target = $region5
    $region4: #{tpu_custom_call.1} parent=1 // pred_region
      %16 = vsyncadd [#allocation3], 0
      %s17 = sshll.u32 %s0, 4
      %s18 = int_to_ptr.hbm [resolvable:$true] %s17
      %s19 = sshll.u32 [#allocation2], 4
      %s20 = int_to_ptr.vmem [resolvable:$true] %s19
      %25 = dma.hbm_to_vmem [thread:$0]  %s18, 1024, %s20, [#allocation3], 256, 256, 16
    $region5: #{tpu_custom_call.1} parent=1 // pred_fallthru
      _
    // Predicated region
    $region6: #{tpu_custom_call.1} parent=1 // pred_check
      _
    $region7: #{tpu_custom_call.1} parent=1 // pred_check_branch
      %27 = sbr.rel (0) target = $region9
    $region8: #{tpu_custom_call.1} parent=1 // pred_region
      %29 = vsyncadd [#allocation6], 0
      %s30 = sshll.u32 %s1, 4
      %s31 = int_to_ptr.hbm [resolvable:$true] %s30
      %s32 = sshll.u32 [#allocation5], 4
      %s33 = int_to_ptr.vmem [resolvable:$true] %s32
      %38 = dma.hbm_to_vmem [thread:$0]  %s31, 3456, %s33, [#allocation6], 128, 128, 8
    $region9: #{tpu_custom_call.1} parent=1 // pred_fallthru
      _
    // Predicated region
    $region10: #{tpu_custom_call.1} parent=1 // pred_check
      _
    $region11: #{tpu_custom_call.1} parent=1 // pred_check_branch
      %40 = sbr.rel (0) target = $region13
    $region12: #{tpu_custom_call.1} parent=1 // pred_region
      %42 = vsyncadd [#allocation6], 0
      %s43 = sshll.u32 %s2, 4
      %s44 = int_to_ptr.hbm [resolvable:$true] %s43
      %s45 = sshll.u32 [#allocation7], 4
      %s46 = int_to_ptr.vmem [resolvable:$true] %s45
      %51 = dma.hbm_to_vmem [thread:$0]  %s44, 2048, %s46, [#allocation6], 128, 128, 8
    $region13: #{tpu_custom_call.1} parent=1 // pred_fallthru
      _
    // Predicated region
    $region14: #{tpu_custom_call.1} parent=1 // pred_check
      _
    $region15: #{tpu_custom_call.1} parent=1 // pred_check_branch
      %53 = sbr.rel (0) target = $region17
    $region16: #{tpu_custom_call.1} parent=1 // pred_region
      _
    $region17: #{tpu_custom_call.1} parent=1 // pred_fallthru
      _
    // Predicated region
    $region18: #{tpu_custom_call.1} parent=1 // pred_check
      _
    $region19: #{tpu_custom_call.1} parent=1 // pred_check_branch
      %55 = sbr.rel (0) target = $region21
    $region20: #{tpu_custom_call.1} parent=1 // pred_region
      _
    $region21: #{tpu_custom_call.1} parent=1 // pred_fallthru
      _
    // Predicated region
    $region22: #{tpu_custom_call.1} parent=1 // pred_check
      _
    $region23: #{tpu_custom_call.1} parent=1 // pred_check_branch
      %57 = sbr.rel (0) target = $region25
    $region24: #{tpu_custom_call.1} parent=1 // pred_region
      %59 = dma.done [#allocation3], 1024
    $region25: #{tpu_custom_call.1} parent=1 // pred_fallthru
      _
    // Predicated region
    $region26: #{tpu_custom_call.1} parent=1 // pred_check
      _
    $region27: #{tpu_custom_call.1} parent=1 // pred_check_branch
      %61 = sbr.rel (0) target = $region29
    $region28: #{tpu_custom_call.1} parent=1 // pred_region
      %63 = dma.done [#allocation6], 3456
    $region29: #{tpu_custom_call.1} parent=1 // pred_fallthru
      _
    // Predicated region
    $region30: #{tpu_custom_call.1} parent=1 // pred_check
      _
    $region31: #{tpu_custom_call.1} parent=1 // pred_check_branch
      %65 = sbr.rel (0) target = $region33
    $region32: #{tpu_custom_call.1} parent=1 // pred_region
      %67 = dma.done [#allocation6], 2048
    $region33: #{tpu_custom_call.1} parent=1 // pred_fallthru
      _
    %v68 = vld [vmem:[#allocation2] sm:$0xff]
    %v69 = vld [vmem:[#allocation2 + $0x8] sm:$0xff]
    %v70 = vld [vmem:[#allocation2 + $0x10] sm:$0xff]
    %v71 = vld [vmem:[#allocation2 + $0x18] sm:$0xff]
    %v72 = vld [vmem:[#allocation2 + $0x20] sm:$0xff]
    %v73 = vld [vmem:[#allocation2 + $0x28] sm:$0xff]
    %v74 = vld [vmem:[#allocation2 + $0x30] sm:$0xff]
    %v75 = vld [vmem:[#allocation2 + $0x38] sm:$0xff]
    %v76 = vld [vmem:[#allocation5] sm:$0xff]
    %v77 = vld [vmem:[#allocation5 + $0x8] sm:$0xff]
    %v78 = vld [vmem:[#allocation5 + $0x10] sm:$0xff]
    %v79 = vld [vmem:[#allocation5 + $0x18] sm:$0xff]
    %v80 = vld [vmem:[#allocation5 + $0x20] sm:$0xff]
    %v81 = vld [vmem:[#allocation5 + $0x28] sm:$0xff]
    %v82 = vld [vmem:[#allocation5 + $0x30] sm:$0xff]
    %v83 = vld [vmem:[#allocation5 + $0x38] sm:$0xff]
    %v84 = vld [vmem:[#allocation5 + $0x40] sm:$0xff]
    %v85 = vld [vmem:[#allocation5 + $0x48] sm:$0xff]
    %v86 = vld [vmem:[#allocation5 + $0x50] sm:$0xff]
    %v87 = vld [vmem:[#allocation5 + $0x58] sm:$0xff]
    %v88 = vld [vmem:[#allocation5 + $0x60] sm:$0xff]
    %v89 = vld [vmem:[#allocation5 + $0x68] sm:$0xff]
    %v90 = vld [vmem:[#allocation5 + $0x70] sm:$0xff]
    %v91 = vld [vmem:[#allocation5 + $0x78] sm:$0xff]
    %v92 = vld [vmem:[#allocation5 + $0x80] sm:$0xff]
    %v93 = vld [vmem:[#allocation5 + $0x88] sm:$0xff]
    %v94 = vld [vmem:[#allocation5 + $0x90] sm:$0xff]
    %v95 = vld [vmem:[#allocation5 + $0x98] sm:$0xff]
    %v96 = vld [vmem:[#allocation5 + $0xa0] sm:$0xff]
    %v97 = vld [vmem:[#allocation5 + $0xa8] sm:$0xff]
    %v98 = vld [vmem:[#allocation5 + $0xb0] sm:$0xff]
    %v99 = vld [vmem:[#allocation5 + $0xb8] sm:$0xff]
    %v100 = vld [vmem:[#allocation5 + $0xc0] sm:$0xff]
    %v101 = vld [vmem:[#allocation5 + $0xc8] sm:$0xff]
    %v102 = vld [vmem:[#allocation5 + $0xd0] sm:$0xff]
    %vm103 = vcmask 719872
    %v105 = vsel %vm103, %v69, 0
    %v108 = vsel %vm103, %v71, 0
    %v111 = vsel %vm103, %v73, 0
    %v114 = vsel %vm103, %v75, 0
    %116 = vmatpush.msra.mxu0 %v91
    %117 = vmatpush.msra.mxu0 %v90
    %118 = vmatpush.msra.mxu0 %v89
    %119 = vmatpush.msra.mxu0 %v88
    %120 = vmatpush.msra.mxu0 %v87
    %121 = vmatpush.msra.mxu0 %v86
    %122 = vmatpush.msra.mxu0 %v85
    %123 = vmatpush.msra.mxu0 %v84
    %124 = vmatpush.msra.mxu0 %v83
    %125 = vmatpush.msra.mxu0 %v82
    %126 = vmatpush.msra.mxu0 %v81
    %127 = vmatpush.msra.mxu0 %v80
    %128 = vmatpush.msra.mxu0 %v79
    %129 = vmatpush.msra.mxu0 %v78
    %130 = vmatpush.msra.mxu0 %v77
    %131 = vmatpush.msra.mxu0 %v76
    %132 = vmatmul.f32.gmra.mxu0 %v68
    %v133 = vpop.f32.mrf.mxu0
    %v134 = vadd.f32 0.0, %v133
    %135 = vmatmul.f32.gmra.mxu0 %v70
    %v136 = vpop.f32.mrf.mxu0
    %v137 = vadd.f32 0.0, %v136
    %138 = vmatmul.f32.gmra.mxu0 %v72
    %v139 = vpop.f32.mrf.mxu0
    %v140 = vadd.f32 0.0, %v139
    %141 = vmatmul.f32.gmra.mxu0 %v74
    %v142 = vpop.f32.mrf.mxu0
    %v143 = vadd.f32 0.0, %v142
    %144 = vdwg.mxu0
    %145 = vmatpush.msra.mxu0 0.0
    %146 = vmatpush.msra.mxu0 0.0
    %147 = vmatpush.msra.mxu0 0.0
    %148 = vmatpush.msra.mxu0 0.0
    %149 = vmatpush.msra.mxu0 0.0
    %150 = vmatpush.msra.mxu0 %v102
    %151 = vmatpush.msra.mxu0 %v101
    %152 = vmatpush.msra.mxu0 %v100
    %153 = vmatpush.msra.mxu0 %v99
    %154 = vmatpush.msra.mxu0 %v98
    %155 = vmatpush.msra.mxu0 %v97
    %156 = vmatpush.msra.mxu0 %v96
    %157 = vmatpush.msra.mxu0 %v95
    %158 = vmatpush.msra.mxu0 %v94
    %159 = vmatpush.msra.mxu0 %v93
    %160 = vmatpush.msra.mxu0 %v92
    %161 = vmatmul.f32.gmra.mxu0 %v105
    %v162 = vpop.f32.mrf.mxu0
    %v163 = vadd.f32 %v134, %v162
    %164 = vmatmul.f32.gmra.mxu0 %v108
    %v165 = vpop.f32.mrf.mxu0
    %v166 = vadd.f32 %v137, %v165
    %167 = vmatmul.f32.gmra.mxu0 %v111
    %v168 = vpop.f32.mrf.mxu0
    %v169 = vadd.f32 %v140, %v168
    %170 = vmatmul.f32.gmra.mxu0 %v114
    %v171 = vpop.f32.mrf.mxu0
    %v172 = vadd.f32 %v143, %v171
    %173 = vdwg.mxu0
    %v174 = vadd.f32 %v163, %v166
    %v175 = vadd.f32 %v174, %v169
    %v176 = vadd.f32 %v175, %v172
    %v177 = vrot.slane %v176, 4
    %v178 = vadd.f32 %v176, %v177
    %v179 = vrot.slane %v178, 2
    %v180 = vadd.f32 %v178, %v179
    %v181 = vrot.slane %v180, 1
    %v182 = vadd.f32 %v180, %v181
    %v183 = vmul.f32 %v163, %v163
    %v184 = vmul.f32 %v166, %v166
    %v185 = vmul.f32 %v169, %v169
    %v186 = vmul.f32 %v172, %v172
    %v187 = vadd.f32 %v183, %v184
    %v188 = vadd.f32 %v187, %v185
    %v189 = vadd.f32 %v188, %v186
    %v190 = vrot.slane %v189, 4
    %v191 = vadd.f32 %v189, %v190
    %v192 = vrot.slane %v191, 2
    %v193 = vadd.f32 %v191, %v192
    %v194 = vrot.slane %v193, 1
    %v195 = vadd.f32 %v193, %v194
    %vm196 = vcmask 1040384
    %v197 = vsel %vm196, %v182, %v195
    %v198 = vld [vmem:[#allocation7] sm:$0xff]
    %v199 = vld [vmem:[#allocation7 + $0x8] sm:$0xff]
    %v200 = vld [vmem:[#allocation7 + $0x10] sm:$0xff]
    %v201 = vld [vmem:[#allocation7 + $0x18] sm:$0xff]
    %v202 = vld [vmem:[#allocation7 + $0x20] sm:$0xff]
    %v203 = vld [vmem:[#allocation7 + $0x28] sm:$0xff]
    %v204 = vld [vmem:[#allocation7 + $0x30] sm:$0xff]
    %v205 = vld [vmem:[#allocation7 + $0x38] sm:$0xff]
    %v206 = vld [vmem:[#allocation7 + $0x40] sm:$0xff]
    %v207 = vld [vmem:[#allocation7 + $0x48] sm:$0xff]
    %v208 = vld [vmem:[#allocation7 + $0x50] sm:$0xff]
    %v209 = vld [vmem:[#allocation7 + $0x58] sm:$0xff]
    %v210 = vld [vmem:[#allocation7 + $0x60] sm:$0xff]
    %v211 = vld [vmem:[#allocation7 + $0x68] sm:$0xff]
    %v212 = vld [vmem:[#allocation7 + $0x70] sm:$0xff]
    %v213 = vld [vmem:[#allocation7 + $0x78] sm:$0xff]
    %214 = vmatpush.msra.mxu0 %v213
    %215 = vmatpush.msra.mxu0 %v212
    %216 = vmatpush.msra.mxu0 %v211
    %217 = vmatpush.msra.mxu0 %v210
    %218 = vmatpush.msra.mxu0 %v209
    %219 = vmatpush.msra.mxu0 %v208
    %220 = vmatpush.msra.mxu0 %v207
    %221 = vmatpush.msra.mxu0 %v206
    %222 = vmatpush.msra.mxu0 %v205
    %223 = vmatpush.msra.mxu0 %v204
    %224 = vmatpush.msra.mxu0 %v203
    %225 = vmatpush.msra.mxu0 %v202
    %226 = vmatpush.msra.mxu0 %v201
    %227 = vmatpush.msra.mxu0 %v200
    %228 = vmatpush.msra.mxu0 %v199
    %229 = vmatpush.msra.mxu0 %v198
    %230 = vmatmul.f32.gmra.mxu0 %v197
    %v231 = vpop.f32.mrf.mxu0
    %v232 = vadd.f32 0.0, %v231
    %233 = vdwg.mxu0
    %v234 = vmul.f32 %v232, 0.001953125
    %v235 = vmul.f32 %v234, %v234
    %v237 = vrot.slane %v235, 7
    %v239 = vsub.f32 %v234, %v237
    %v240 = vadd.f32 %v239, 1e-05
    %v241 = vrsqrt.pop %v240
    %v242 = vmul.f32 %v241, %v240
    %v243 = vmul.f32 %v242, %v241
    %v244 = vmul.f32 0.5, %v243
    %v245 = vsub.f32 1.5, %v244
    %v246 = vmul.f32 %v241, %v245
    %vm247 = vweird.f32 %v240
    %vm248 = vweird.f32 %v241
    %vm249 = vmor %vm247, %vm248
    %v250 = vsel %vm249, %v241, %v246
    %v251 = vld [vmem:[%s3] sm:$0x1]
    %253 = vst [vmem:[#allocation1] sm:$0xff] %v250
    %s254 = scalar_lea.vmem [#allocation1], 1
    %v255 = vld [vmem:[%s254] ss:$9 sm:$0xff]
    %v257 = vmul.f32 %v251, %v255
    %v258 = vld [vmem:[%s4] sm:$0x1]
    %v259 = vmul.f32 %v234, %v257
    %v260 = vsub.f32 %v258, %v259
    %v262 = vperm.slane %v257, 0
    %v264 = vmul.f32 %v163, %v262
    %v265 = vmul.f32 %v166, %v262
    %v266 = vmul.f32 %v169, %v262
    %v267 = vmul.f32 %v172, %v262
    %v269 = vperm.slane %v260, 0
    %v271 = vadd.f32 %v264, %v269
    %v272 = vadd.f32 %v265, %v269
    %v273 = vadd.f32 %v266, %v269
    %v274 = vadd.f32 %v267, %v269
    %275 = vst [vmem:[#allocation8] sm:$0xff] %v271
    %276 = vst [vmem:[#allocation8 + $0x8] sm:$0xff] %v272
    %277 = vst [vmem:[#allocation8 + $0x10] sm:$0xff] %v273
    %278 = vst [vmem:[#allocation8 + $0x18] sm:$0xff] %v274
    // Predicated region
    $region34: #{tpu_custom_call.1} parent=1 // pred_check
      _
    $region35: #{tpu_custom_call.1} parent=1 // pred_check_branch
      %280 = sbr.rel (0) target = $region37
    $region36: #{tpu_custom_call.1} parent=1 // pred_region
      %282 = vsyncadd [#allocation4], 0
      %s283 = sshll.u32 [#allocation8], 4
      %s284 = int_to_ptr.vmem [resolvable:$true] %s283
      %s285 = sshll.u32 %s5, 4
      %s286 = int_to_ptr.hbm [resolvable:$true] %s285
      %291 = dma.vmem_to_hbm [thread:$0]  %s284, 512, %s286, [#allocation4], 128, 128, 8
    $region37: #{tpu_custom_call.1} parent=1 // pred_fallthru
      _
    // Predicated region
    $region38: #{tpu_custom_call.1} parent=1 // pred_check
      _
    $region39: #{tpu_custom_call.1} parent=1 // pred_check_branch
      %293 = sbr.rel (0) target = $region41
    $region40: #{tpu_custom_call.1} parent=1 // pred_region
      %295 = dma.done [#allocation4], 512
    $region41: #{tpu_custom_call.1} parent=1 // pred_fallthru
      _
    %296 = vsyncpa [#allocation3], 1
    %297 = vsyncpa [#allocation6], 1
    %298 = vsyncpa [#allocation4], 1

</llo_original>
